<compile_context>
chip_gen: v7x
topology: tpu7x:2x2x1
jax: 0.10.0
libtpu: 0.0.40
codegen_flags: <defaults>
</compile_context>

<pallas_src>
import functools

import jax
import jax.numpy as jnp
from jax.experimental import pallas as pl
from jax.experimental.pallas import tpu as pltpu


def _chip_config():
    """Per-generation tuning: (#TensorCores, per-input tile bytes, vmem limit)."""
    try:
        kind = jax.devices()[0].device_kind.lower()
    except Exception:  # pragma: no cover
        kind = ""
    if "v7" in kind or "7x" in kind:
        # v7x: 2 TCs/chip, 64 MiB VMEM per TC -> slightly smaller tiles/limit.
        return 2, 3 * 1024 * 1024, 48 * 1024 * 1024
    if ("v4" in kind and "lite" not in kind) or "v5p" in kind:
        # Megacore parts with 128 MiB VMEM.
        return 2, 4 * 1024 * 1024, 64 * 1024 * 1024
    # v5e / v6e (single TensorCore, 128 MiB VMEM) and unknown chips.
    return 1, 4 * 1024 * 1024, 64 * 1024 * 1024


def _ranking_loss_kernel(o1_ref, o2_ref, t_ref, out_ref, *, tm, tn, kr_steps,
                         n_rows, n_cols, mask_rows, mask_cols):
    kr = pl.program_id(1)
    kc = pl.program_id(2)

    @pl.when((kr == 0) & (kc == 0))
    def _():
        out_ref[...] = jnp.zeros_like(out_ref)

    d = o2_ref[...].astype(jnp.float32) - o1_ref[...].astype(jnp.float32)
    t = t_ref[...].astype(jnp.float32)
    # losses = -target * d + log(1 + exp(d)), in the overflow-safe softplus
    # form max(d, 0) + log(1 + exp(-|d|)).
    losses = -t * d + (jnp.maximum(d, 0.0) + jnp.log(1.0 + jnp.exp(-jnp.abs(d))))

    def _accumulate(vals):
        if tm % 8 == 0:
            # Partial-sum over the row-tile axis only: pure VPU vector adds
            # (the (tm//8, 8, tn) regroup is vreg-layout preserving).
            out_ref[0] += vals.reshape(tm // 8, 8, tn).sum(axis=0)
        else:
            out_ref[0] += vals  # tiny full-M tile (tm == ACC_ROWS)

    if not (mask_rows or mask_cols):
        _accumulate(losses)
    else:
        p = pl.program_id(0)
        row0 = (p * kr_steps + kr) * tm
        col0 = kc * tn
        straddles = None
        if mask_rows:
            straddles = row0 + tm > n_rows
        if mask_cols:
            c = col0 + tn > n_cols
            straddles = c if straddles is None else straddles | c

        @pl.when(straddles)
        def _():
            valid = None
            if mask_rows:
                rows = row0 + jax.lax.broadcasted_iota(jnp.int32, (tm, tn), 0)
                valid = rows < n_rows
            if mask_cols:
                cols = col0 + jax.lax.broadcasted_iota(jnp.int32, (tm, tn), 1)
                cv = cols < n_cols
                valid = cv if valid is None else valid & cv
            _accumulate(jnp.where(valid, losses, 0.0))

        @pl.when(jnp.logical_not(straddles))
        def _():
            _accumulate(losses)


def _stable_softplus_sum(o1, o2, t):
    d = o2.astype(jnp.float32) - o1.astype(jnp.float32)
    losses = -t.astype(jnp.float32) * d + (
        jnp.maximum(d, 0.0) + jnp.log(1.0 + jnp.exp(-jnp.abs(d))))
    return jnp.sum(losses)


def ranking_loss(output1, output2, target, size_average=True, margin=0.1,
                 block_rows=None, block_cols=None):
    """Pallas TPU implementation of RankingLoss.forward.

    `margin` is unused (parity with the PyTorch module, which also ignores it
    in forward).  Inputs may be any float dtype; the wrapper never casts or
    pads them in HBM (bf16 inputs halve traffic on this bandwidth-bound
    kernel; the f32 upcast happens inside the kernel).  `block_rows` /
    `block_cols` optionally override the tile shape (for testing).
    """
    assert output1.shape == output2.shape == target.shape
    shape = output1.shape
    n_elems = 1
    for s in shape:
        n_elems *= int(s)

    num_tc, tile_bytes, vmem_limit = _chip_config()
    itemsize = max(jnp.dtype(a.dtype).itemsize for a in (output1, output2, target))
    # Sublane alignment of the row tile: 8 for 4-byte dtypes, 16 for bf16, ...
    row_align = max(8 * (4 // max(1, jnp.dtype(a.dtype).itemsize))
                    for a in (output1, output2, target))
    row_align = max(8, row_align)

    # ---- choose a copy-free 2-D view (M, N) of the inputs -------------------
    small = n_elems < 8 * 128
    if output1.ndim >= 2 and not small:
        N = int(shape[-1])
        M = n_elems // N
    elif output1.ndim == 1 and not small and n_elems % 128 == 0:
        N = 128
        M = n_elems // 128
    else:
        # Degenerate / tiny / odd-length-1-D inputs: a fused XLA elementwise +
        # reduce is already near roofline and avoids any relayout copies.
        total = _stable_softplus_sum(output1, output2, target)
        return total / n_elems if size_average else total

    o1 = output1.reshape(M, N)
    o2 = output2.reshape(M, N)
    t = target.reshape(M, N)

    # ---- lane tile (tn): full width if cheap, else a multiple of 128 --------
    if block_cols is not None:
        tn = max(128, (int(block_cols) // 128) * 128)
        tn = N if tn >= N else tn
    elif N <= 128 or N * itemsize * row_align <= tile_bytes:
        tn = N
    else:
        tn = max(128, ((tile_bytes // (row_align * itemsize)) // 128) * 128)
        tn = N if tn >= N else tn

    # ---- row tile (tm): fill the per-input tile budget ----------------------
    rows_budget = max(1, tile_bytes // (tn * itemsize))
    desired = int(block_rows) if block_rows is not None else rows_budget
    if M <= row_align:
        tm = M                                    # full first dim
    else:
        tm = max(row_align, (desired // row_align) * row_align)
        tm = min(tm, (M // row_align) * row_align)

    num_row_tiles = pl.cdiv(M, tm)
    num_col_tiles = pl.cdiv(N, tn)
    P = num_tc if (num_tc > 1 and num_row_tiles >= 2) else 1
    KR = pl.cdiv(num_row_tiles, P)
    KC = num_col_tiles

    mask_rows = P * KR * tm > M        # row over-run (incl. fully-OOB tiles)
    mask_cols = KC * tn > N            # lane over-run on the last column tile

    if P * KR > num_row_tiles:
        # The P-way split may create up to P-1 fully out-of-range logical
        # tiles; clamp their DMA to the last real tile (the in-kernel mask,
        # which uses the *logical* row index, zeroes their contribution).
        last_row_block = num_row_tiles - 1

        def row_block(p, kr):
            return jnp.minimum(p * KR + kr, last_row_block)
    else:
        def row_block(p, kr):
            return p * KR + kr

    acc_rows = 8 if tm % 8 == 0 else tm

    kernel = functools.partial(
        _ranking_loss_kernel, tm=tm, tn=tn, kr_steps=KR, n_rows=M, n_cols=N,
        mask_rows=mask_rows, mask_cols=mask_cols)

    in_spec = pl.BlockSpec((tm, tn), lambda p, kr, kc: (row_block(p, kr), kc))
    out_spec = pl.BlockSpec((1, acc_rows, tn), lambda p, kr, kc: (p, 0, 0))

    in_bytes = sum(jnp.dtype(a.dtype).itemsize for a in (o1, o2, t)) * n_elems

    partials = pl.pallas_call(
        kernel,
        out_shape=jax.ShapeDtypeStruct((P, acc_rows, tn), jnp.float32),
        grid_spec=pltpu.PrefetchScalarGridSpec(
            num_scalar_prefetch=0,
            grid=(P, KR, KC),
            in_specs=[in_spec, in_spec, in_spec],
            out_specs=out_spec,
        ),
        compiler_params=pltpu.CompilerParams(
            # NOTE: on v7x, verify in a profile that the leading "parallel"
            # axis engages both TensorCores; switch it to pltpu.CORE_PARALLEL
            # if one core idles.
            dimension_semantics=("parallel", "arbitrary", "arbitrary"),
            vmem_limit_bytes=vmem_limit,
        ),
        cost_estimate=pl.CostEstimate(
            flops=7 * n_elems,
            transcendentals=2 * n_elems,
            bytes_accessed=in_bytes + P * acc_rows * tn * 4,
        ),
    )(o1, o2, t)

    total = jnp.sum(partials)
    if size_average:
        return total / n_elems
    return total


def _reference(output1, output2, target, size_average=True):
    # Naive form, exactly as the PyTorch module writes it.
    d = output2.astype(jnp.float32) - output1.astype(jnp.float32)
    losses = -target.astype(jnp.float32) * d + jnp.log(1.0 + jnp.exp(d))
    return losses.mean() if size_average else losses.sum()


if __name__ == "__main__":
    key = jax.random.PRNGKey(0)

    def make(shape, k, dtype=jnp.float32):
        k1, k2, k3 = jax.random.split(k, 3)
        a = jax.random.normal(k1, shape, dtype=jnp.float32).astype(dtype)
        b = jax.random.normal(k2, shape, dtype=jnp.float32).astype(dtype)
        tgt = jax.random.bernoulli(k3, p=0.5, shape=shape).astype(dtype)
        return a, b, tgt

    keys = jax.random.split(key, 8)

    def check(name, got, ref, rtol=5e-5, atol=1e-3):
        got = jax.block_until_ready(got)
        assert jnp.allclose(got, ref, rtol=rtol, atol=atol), (name, got, ref)

    # 1) Aligned 2-D case, default tiling (single block).
    o1, o2, tgt = make((64, 256), keys[0])
    for sa in (True, False):
        check(("base", sa), ranking_loss(o1, o2, tgt, size_average=sa),
              _reference(o1, o2, tgt, size_average=sa))

    # 2) Forced small row tiles -> multi-step accumulation in the resident
    #    output block (and a 2-core row split on megacore parts).
    check("blk8", ranking_loss(o1, o2, tgt, block_rows=8),
          _reference(o1, o2, tgt))

    # 3) Ragged rows / non-128 lane width -> grid over-run + in-kernel row
    #    mask; no wrapper-side padding pass over HBM.
    o1r, o2r, tr = make((50, 200), keys[1])
    for sa in (True, False):
        check(("ragged", sa),
              ranking_loss(o1r, o2r, tr, size_average=sa, block_rows=16),
              _reference(o1r, o2r, tr, size_average=sa))

    # 4) Lane tiling + both row and column masks (3-D grid path).
    o1w, o2w, tw = make((18, 640), keys[2])
    check("lane_tiled",
          ranking_loss(o1w, o2w, tw, block_rows=8, block_cols=256),
          _reference(o1w, o2w, tw))

    # 5) bf16 inputs stream at native width (upcast happens in-kernel).
    o1b, o2b, tb = make((64, 256), keys[3], dtype=jnp.bfloat16)
    check("bf16", ranking_loss(o1b, o2b, tb),
          _reference(o1b, o2b, tb), rtol=1e-4, atol=1e-3)

    # 6) 1-D input (length % 128 == 0) -> lane-dense (len/128, 128) view.
    o1v, o2v, tv = make((4096,), keys[4])
    check("vec", ranking_loss(o1v, o2v, tv, block_rows=8),
          _reference(o1v, o2v, tv))

    print("KERNEL_OK")
</pallas_src>

<mosaic_0001>
module attributes {stable_mosaic.version = 11 : i64} {
  func.func @_ranking_loss_kernel(%arg0: i32, %arg1: i32, %arg2: i32, %arg3: memref<64x256xf32, #tpu.memory_space<vmem>>, %arg4: memref<64x256xf32, #tpu.memory_space<vmem>>, %arg5: memref<64x256xf32, #tpu.memory_space<vmem>>, %arg6: memref<1x8x256xf32, #tpu.memory_space<vmem>>) attributes {dimension_semantics = [#tpu.dimension_semantics<parallel>, #tpu.dimension_semantics<arbitrary>, #tpu.dimension_semantics<arbitrary>], iteration_bounds = array<i64: 1, 1, 1>, scalar_prefetch = 0 : i64, scratch_operands = 0 : i64, tpu.core_type = #tpu.core_type<tc>, window_params = [{transform_indices = @transform_0, window_bounds = array<i64: 64, 256>}, {transform_indices = @transform_1, window_bounds = array<i64: 64, 256>}, {transform_indices = @transform_2, window_bounds = array<i64: 64, 256>}, {transform_indices = @transform_3, window_bounds = array<i64: 1, 8, 256>}]} {
    %c0_i32 = arith.constant 0 : i32
    %0 = arith.cmpi eq, %arg1, %c0_i32 : i32
    %c0_i32_0 = arith.constant 0 : i32
    %1 = arith.cmpi eq, %arg2, %c0_i32_0 : i32
    %2 = arith.andi %0, %1 : i1
    %3 = arith.extui %2 : i1 to i32
    %c0_i32_1 = arith.constant 0 : i32
    %4 = arith.cmpi ne, %3, %c0_i32_1 : i32
    scf.if %4 {
      %cst_17 = arith.constant 0.000000e+00 : f32
      %31 = vector.broadcast %cst_17 : f32 to vector<1x8x256xf32>
      %c0_18 = arith.constant 0 : index
      %c0_19 = arith.constant 0 : index
      %c0_20 = arith.constant 0 : index
      %32 = vector.load %arg6[%c0_18, %c0_19, %c0_20] : memref<1x8x256xf32, #tpu.memory_space<vmem>>, vector<1x8x256xf32>
      tpu.vector_store %arg6[%c0_18, %c0_19, %c0_20], %31 {strides = array<i32>} : memref<1x8x256xf32, #tpu.memory_space<vmem>>, vector<1x8x256xf32>,
    } else {
    }
    %c0 = arith.constant 0 : index
    %c0_2 = arith.constant 0 : index
    %5 = vector.load %arg4[%c0, %c0_2] : memref<64x256xf32, #tpu.memory_space<vmem>>, vector<64x256xf32>
    %c0_3 = arith.constant 0 : index
    %c0_4 = arith.constant 0 : index
    %6 = vector.load %arg3[%c0_3, %c0_4] : memref<64x256xf32, #tpu.memory_space<vmem>>, vector<64x256xf32>
    %7 = arith.subf %5, %6 : vector<64x256xf32>
    %c0_5 = arith.constant 0 : index
    %c0_6 = arith.constant 0 : index
    %8 = vector.load %arg5[%c0_5, %c0_6] : memref<64x256xf32, #tpu.memory_space<vmem>>, vector<64x256xf32>
    %cst = arith.constant 0.000000e+00 : f32
    %9 = vector.broadcast %cst : f32 to vector<64x256xf32>
    %10 = arith.subf %9, %8 : vector<64x256xf32>
    %11 = arith.mulf %10, %7 : vector<64x256xf32>
    %cst_7 = arith.constant 0.000000e+00 : f32
    %12 = vector.broadcast %cst_7 : f32 to vector<64x256xf32>
    %13 = arith.maximumf %7, %12 : vector<64x256xf32>
    %14 = math.absf %7 : vector<64x256xf32>
    %cst_8 = arith.constant 0.000000e+00 : f32
    %15 = vector.broadcast %cst_8 : f32 to vector<64x256xf32>
    %16 = arith.subf %15, %14 : vector<64x256xf32>
    %17 = math.exp %16 : vector<64x256xf32>
    %cst_9 = arith.constant 1.000000e+00 : f32
    %18 = vector.broadcast %cst_9 : f32 to vector<64x256xf32>
    %19 = arith.addf %18, %17 : vector<64x256xf32>
    %20 = math.log %19 : vector<64x256xf32>
    %21 = arith.addf %13, %20 : vector<64x256xf32>
    %22 = arith.addf %11, %21 : vector<64x256xf32>
    %c0_10 = arith.constant 0 : index
    %c0_11 = arith.constant 0 : index
    %c0_12 = arith.constant 0 : index
    %23 = vector.load %arg6[%c0_10, %c0_11, %c0_12] : memref<1x8x256xf32, #tpu.memory_space<vmem>>, vector<1x8x256xf32>
    %24 = vector.shape_cast %23 : vector<1x8x256xf32> to vector<8x256xf32>
    %25 = vector.shape_cast %22 : vector<64x256xf32> to vector<8x8x256xf32>
    %cst_13 = arith.constant dense<0.000000e+00> : vector<8x256xf32>
    %26 = vector.multi_reduction <add>, %25, %cst_13 [0] : vector<8x8x256xf32> to vector<8x256xf32>
    %27 = arith.addf %24, %26 : vector<8x256xf32>
    %c0_14 = arith.constant 0 : index
    %c0_15 = arith.constant 0 : index
    %c0_16 = arith.constant 0 : index
    %28 = vector.load %arg6[%c0_14, %c0_15, %c0_16] : memref<1x8x256xf32, #tpu.memory_space<vmem>>, vector<1x8x256xf32>
    %29 = vector.shape_cast %28 : vector<1x8x256xf32> to vector<8x256xf32>
    %30 = vector.shape_cast %27 : vector<8x256xf32> to vector<1x8x256xf32>
    tpu.vector_store %arg6[%c0_14, %c0_15, %c0_16], %30 {strides = array<i32>} : memref<1x8x256xf32, #tpu.memory_space<vmem>>, vector<1x8x256xf32>,
    return
  }
  func.func @transform_0(%arg0: i32, %arg1: i32, %arg2: i32) -> (i32, i32) {
    %c1_i32 = arith.constant 1 : i32
    %0 = arith.muli %arg0, %c1_i32 : i32
    %1 = arith.addi %0, %arg1 : i32
    %c0_i32 = arith.constant 0 : i32
    return %1, %arg2 : i32, i32
  }
  func.func @transform_1(%arg0: i32, %arg1: i32, %arg2: i32) -> (i32, i32) {
    %c1_i32 = arith.constant 1 : i32
    %0 = arith.muli %arg0, %c1_i32 : i32
    %1 = arith.addi %0, %arg1 : i32
    %c0_i32 = arith.constant 0 : i32
    return %1, %arg2 : i32, i32
  }
  func.func @transform_2(%arg0: i32, %arg1: i32, %arg2: i32) -> (i32, i32) {
    %c1_i32 = arith.constant 1 : i32
    %0 = arith.muli %arg0, %c1_i32 : i32
    %1 = arith.addi %0, %arg1 : i32
    %c0_i32 = arith.constant 0 : i32
    return %1, %arg2 : i32, i32
  }
  func.func @transform_3(%arg0: i32, %arg1: i32, %arg2: i32) -> (i32, i32, i32) {
    %c0_i32 = arith.constant 0 : i32
    %c0_i32_0 = arith.constant 0 : i32
    %c0_i32_1 = arith.constant 0 : i32
    return %arg0, %c0_i32, %c0_i32_0 : i32, i32, i32
  }
}

</mosaic_0001>

<llo_original>
// kernel: tpu_custom_call.1
$region0: #{tpu_custom_call.1}
  #allocation0 [shape = 'u32[]', space=smem, size = 0x4, offset = 0x4, fixed_abs, tag = 'smem constant byte address 0x4 - core index']
  #allocation1 [shape = 'u32[144,128]{1,0:T(1,128)}', space=vmem, size = 0x12000, scoped, tag = 'internal scratch']
  %s0 = inlined_call_operand.hbm [shape: f32[64,256], index: 0, kind: input, shape index: {}]
  %s1 = inlined_call_operand.hbm [shape: f32[64,256], index: 1, kind: input, shape index: {}]
  %s2 = inlined_call_operand.hbm [shape: f32[64,256], index: 2, kind: input, shape index: {}]
  %s3 = inlined_call_operand.hbm [shape: f32[1,8,256], index: 3, kind: output, shape index: {}]
  %s4 = sld [smem:[#allocation0]]
  $region38: #{tpu_custom_call.1} parent=0
    _
  %s6 = ssub.s32 1, %s4
  %s7 = scalar_select 0, %s6, %s4
  $region1: #{tpu_custom_call.1} parent=0
    #allocation2 [shape = 'u8[65536]{0}', space=vmem, size = 0x10000, scoped, tag = 'input window, operand 0, single buffered']
    #allocation3 [shape = 's32[1]{0}', space=sflag, size = 0x4, scoped, tag = 'scoped memory for tpu_custom_call.1']
    #allocation4 [shape = 's32[1]{0}', space=sflag, size = 0x4, scoped, tag = 'scoped memory for tpu_custom_call.1']
    #allocation5 [shape = 'u8[65536]{0}', space=vmem, size = 0x10000, scoped, tag = 'input window, operand 1, single buffered']
    #allocation6 [shape = 's32[1]{0}', space=sflag, size = 0x4, scoped, tag = 'scoped memory for tpu_custom_call.1']
    #allocation7 [shape = 'u8[65536]{0}', space=vmem, size = 0x10000, scoped, tag = 'input window, operand 2, single buffered']
    #allocation8 [shape = 'u8[8192]{0}', space=vmem, size = 0x2000, scoped, tag = 'output window, operand 0, single buffered']
    %8 = vsyncpa [#allocation3], 0
    %9 = vsyncpa [#allocation6], 0
    %10 = vsyncpa [#allocation4], 0
    // Predicated region
    $region2: #{tpu_custom_call.1} parent=1 // pred_check
      _
    $region3: #{tpu_custom_call.1} parent=1 // pred_check_branch
      %12 = sbr.rel (0) target = $region5
    $region4: #{tpu_custom_call.1} parent=1 // pred_region
      %s13 = sadd.s32 0, 0
      %s14 = smul.u32 8, %s13
      %s16 = ssub.s32 2048, 2048
      %17 = vsyncadd [#allocation3], %s16
      %s18 = smul.addr %s14, 2
      %s19 = smul.addr %s18, 128
      %s20 = scalar_lea.hbm %s0, %s19
      %s21 = sshll.u32 [#allocation2], 4
      %s22 = int_to_ptr.vmem [resolvable:$true] %s21
      %27 = dma.hbm_to_vmem [thread:$0]  %s20, 2048, %s22, [#allocation3], 256, 256, 16
    $region5: #{tpu_custom_call.1} parent=1 // pred_fallthru
      _
    // Predicated region
    $region6: #{tpu_custom_call.1} parent=1 // pred_check
      _
    $region7: #{tpu_custom_call.1} parent=1 // pred_check_branch
      %29 = sbr.rel (0) target = $region9
    $region8: #{tpu_custom_call.1} parent=1 // pred_region
      %s30 = sadd.s32 0, 0
      %s31 = smul.u32 8, %s30
      %s33 = ssub.s32 2048, 2048
      %34 = vsyncadd [#allocation6], %s33
      %s35 = smul.addr %s31, 2
      %s36 = smul.addr %s35, 128
      %s37 = scalar_lea.hbm %s1, %s36
      %s38 = sshll.u32 [#allocation5], 4
      %s39 = int_to_ptr.vmem [resolvable:$true] %s38
      %44 = dma.hbm_to_vmem [thread:$0]  %s37, 2048, %s39, [#allocation6], 256, 256, 16
    $region9: #{tpu_custom_call.1} parent=1 // pred_fallthru
      _
    // Predicated region
    $region10: #{tpu_custom_call.1} parent=1 // pred_check
      _
    $region11: #{tpu_custom_call.1} parent=1 // pred_check_branch
      %46 = sbr.rel (0) target = $region13
    $region12: #{tpu_custom_call.1} parent=1 // pred_region
      %s47 = sadd.s32 0, 0
      %s48 = smul.u32 8, %s47
      %s50 = ssub.s32 2048, 2048
      %51 = vsyncadd [#allocation6], %s50
      %s52 = smul.addr %s48, 2
      %s53 = smul.addr %s52, 128
      %s54 = scalar_lea.hbm %s2, %s53
      %s55 = sshll.u32 [#allocation7], 4
      %s56 = int_to_ptr.vmem [resolvable:$true] %s55
      %61 = dma.hbm_to_vmem [thread:$0]  %s54, 2048, %s56, [#allocation6], 256, 256, 16
    $region13: #{tpu_custom_call.1} parent=1 // pred_fallthru
      _
    // Predicated region
    $region14: #{tpu_custom_call.1} parent=1 // pred_check
      _
    $region15: #{tpu_custom_call.1} parent=1 // pred_check_branch
      %63 = sbr.rel (0) target = $region17
    $region16: #{tpu_custom_call.1} parent=1 // pred_region
      %64 = dma.done [#allocation3], 2048
    $region17: #{tpu_custom_call.1} parent=1 // pred_fallthru
      _
    // Predicated region
    $region18: #{tpu_custom_call.1} parent=1 // pred_check
      _
    $region19: #{tpu_custom_call.1} parent=1 // pred_check_branch
      %66 = sbr.rel (0) target = $region21
    $region20: #{tpu_custom_call.1} parent=1 // pred_region
      %67 = dma.done [#allocation6], 2048
    $region21: #{tpu_custom_call.1} parent=1 // pred_fallthru
      _
    // Predicated region
    $region22: #{tpu_custom_call.1} parent=1 // pred_check
      _
    $region23: #{tpu_custom_call.1} parent=1 // pred_check_branch
      %69 = sbr.rel (0) target = $region25
    $region24: #{tpu_custom_call.1} parent=1 // pred_region
      %70 = dma.done [#allocation6], 2048
    $region25: #{tpu_custom_call.1} parent=1 // pred_fallthru
      _
    %s71 = sadd.s32 0, 0
    %s72 = smul.u32 8, %s71
    %s73 = sadd.s32 0, 0
    %s74 = smul.u32 8, %s73
    %s75 = sadd.s32 0, 0
    %s76 = smul.u32 8, %s75
    %p77 = scmp.eq.s32.totalorder 0, 0
    %p78 = scmp.eq.s32.totalorder 0, 0
    %p79 = pnand %p77, %p78
    %p80 = pneg %p79
    // Predicated region
    $region26: #{tpu_custom_call.1} parent=1 // pred_check
      _
    $region27: #{tpu_custom_call.1} parent=1 // pred_check_branch
      %82 = sbr.rel (%p79) target = $region29
    $region28: #{tpu_custom_call.1} parent=1 // pred_region
      %83 = vst [vmem:[#allocation8] sm:$0xff] 0.0
      %84 = vst [vmem:[#allocation8 + $0x8] sm:$0xff] 0.0
    $region29: #{tpu_custom_call.1} parent=1 // pred_fallthru
      _
    %v85 = vld [vmem:[#allocation5] sm:$0xff]
    %v86 = vld [vmem:[#allocation5 + $0x8] sm:$0xff]
    %v87 = vld [vmem:[#allocation5 + $0x10] sm:$0xff]
    %v88 = vld [vmem:[#allocation5 + $0x18] sm:$0xff]
    %v89 = vld [vmem:[#allocation5 + $0x20] sm:$0xff]
    %v90 = vld [vmem:[#allocation5 + $0x28] sm:$0xff]
    %v91 = vld [vmem:[#allocation5 + $0x30] sm:$0xff]
    %v92 = vld [vmem:[#allocation5 + $0x38] sm:$0xff]
    %v93 = vld [vmem:[#allocation5 + $0x40] sm:$0xff]
    %v94 = vld [vmem:[#allocation5 + $0x48] sm:$0xff]
    %v95 = vld [vmem:[#allocation5 + $0x50] sm:$0xff]
    %v96 = vld [vmem:[#allocation5 + $0x58] sm:$0xff]
    %v97 = vld [vmem:[#allocation5 + $0x60] sm:$0xff]
    %v98 = vld [vmem:[#allocation5 + $0x68] sm:$0xff]
    %v99 = vld [vmem:[#allocation5 + $0x70] sm:$0xff]
    %v100 = vld [vmem:[#allocation5 + $0x78] sm:$0xff]
    %v101 = vld [vmem:[#allocation2] sm:$0xff]
    %v102 = vld [vmem:[#allocation2 + $0x8] sm:$0xff]
    %v103 = vld [vmem:[#allocation2 + $0x10] sm:$0xff]
    %v104 = vld [vmem:[#allocation2 + $0x18] sm:$0xff]
    %v105 = vld [vmem:[#allocation2 + $0x20] sm:$0xff]
    %v106 = vld [vmem:[#allocation2 + $0x28] sm:$0xff]
    %v107 = vld [vmem:[#allocation2 + $0x30] sm:$0xff]
    %v108 = vld [vmem:[#allocation2 + $0x38] sm:$0xff]
    %v109 = vld [vmem:[#allocation2 + $0x40] sm:$0xff]
    %v110 = vld [vmem:[#allocation2 + $0x48] sm:$0xff]
    %v111 = vld [vmem:[#allocation2 + $0x50] sm:$0xff]
    %v112 = vld [vmem:[#allocation2 + $0x58] sm:$0xff]
    %v113 = vld [vmem:[#allocation2 + $0x60] sm:$0xff]
    %v114 = vld [vmem:[#allocation2 + $0x68] sm:$0xff]
    %v115 = vld [vmem:[#allocation2 + $0x70] sm:$0xff]
    %v116 = vld [vmem:[#allocation2 + $0x78] sm:$0xff]
    %v117 = vsub.f32 %v85, %v101
    %v118 = vsub.f32 %v86, %v102
    %v119 = vsub.f32 %v87, %v103
    %v120 = vsub.f32 %v88, %v104
    %v121 = vsub.f32 %v89, %v105
    %v122 = vsub.f32 %v90, %v106
    %v123 = vsub.f32 %v91, %v107
    %v124 = vsub.f32 %v92, %v108
    %v125 = vsub.f32 %v93, %v109
    %v126 = vsub.f32 %v94, %v110
    %v127 = vsub.f32 %v95, %v111
    %v128 = vsub.f32 %v96, %v112
    %v129 = vsub.f32 %v97, %v113
    %v130 = vsub.f32 %v98, %v114
    %v131 = vsub.f32 %v99, %v115
    %v132 = vsub.f32 %v100, %v116
    %v133 = vld [vmem:[#allocation7] sm:$0xff]
    %v134 = vld [vmem:[#allocation7 + $0x8] sm:$0xff]
    %v135 = vld [vmem:[#allocation7 + $0x10] sm:$0xff]
    %v136 = vld [vmem:[#allocation7 + $0x18] sm:$0xff]
    %v137 = vld [vmem:[#allocation7 + $0x20] sm:$0xff]
    %v138 = vld [vmem:[#allocation7 + $0x28] sm:$0xff]
    %v139 = vld [vmem:[#allocation7 + $0x30] sm:$0xff]
    %v140 = vld [vmem:[#allocation7 + $0x38] sm:$0xff]
    %v141 = vld [vmem:[#allocation7 + $0x40] sm:$0xff]
    %v142 = vld [vmem:[#allocation7 + $0x48] sm:$0xff]
    %v143 = vld [vmem:[#allocation7 + $0x50] sm:$0xff]
    %v144 = vld [vmem:[#allocation7 + $0x58] sm:$0xff]
    %v145 = vld [vmem:[#allocation7 + $0x60] sm:$0xff]
    %v146 = vld [vmem:[#allocation7 + $0x68] sm:$0xff]
    %v147 = vld [vmem:[#allocation7 + $0x70] sm:$0xff]
    %v148 = vld [vmem:[#allocation7 + $0x78] sm:$0xff]
    %v149 = vsub.f32 0.0, %v133
    %v150 = vsub.f32 0.0, %v134
    %v151 = vsub.f32 0.0, %v135
    %v152 = vsub.f32 0.0, %v136
    %v153 = vsub.f32 0.0, %v137
    %v154 = vsub.f32 0.0, %v138
    %v155 = vsub.f32 0.0, %v139
    %v156 = vsub.f32 0.0, %v140
    %v157 = vsub.f32 0.0, %v141
    %v158 = vsub.f32 0.0, %v142
    %v159 = vsub.f32 0.0, %v143
    %v160 = vsub.f32 0.0, %v144
    %v161 = vsub.f32 0.0, %v145
    %v162 = vsub.f32 0.0, %v146
    %v163 = vsub.f32 0.0, %v147
    %v164 = vsub.f32 0.0, %v148
    %v165 = vmul.f32 %v149, %v117
    %v166 = vmul.f32 %v150, %v118
    %v167 = vmul.f32 %v151, %v119
    %v168 = vmul.f32 %v152, %v120
    %v169 = vmul.f32 %v153, %v121
    %v170 = vmul.f32 %v154, %v122
    %v171 = vmul.f32 %v155, %v123
    %v172 = vmul.f32 %v156, %v124
    %v173 = vmul.f32 %v157, %v125
    %v174 = vmul.f32 %v158, %v126
    %v175 = vmul.f32 %v159, %v127
    %v176 = vmul.f32 %v160, %v128
    %v177 = vmul.f32 %v161, %v129
    %v178 = vmul.f32 %v162, %v130
    %v179 = vmul.f32 %v163, %v131
    %v180 = vmul.f32 %v164, %v132
    %v181 = vmax.f32 %v117, 0.0
    %v182 = vmax.f32 %v118, 0.0
    %v183 = vmax.f32 %v119, 0.0
    %v184 = vmax.f32 %v120, 0.0
    %v185 = vmax.f32 %v121, 0.0
    %v186 = vmax.f32 %v122, 0.0
    %v187 = vmax.f32 %v123, 0.0
    %v188 = vmax.f32 %v124, 0.0
    %v189 = vmax.f32 %v125, 0.0
    %v190 = vmax.f32 %v126, 0.0
    %v191 = vmax.f32 %v127, 0.0
    %v192 = vmax.f32 %v128, 0.0
    %v193 = vmax.f32 %v129, 0.0
    %v194 = vmax.f32 %v130, 0.0
    %v195 = vmax.f32 %v131, 0.0
    %v196 = vmax.f32 %v132, 0.0
    %v197 = vand.u32 2147483647, %v117
    %v198 = vand.u32 2147483647, %v118
    %v199 = vand.u32 2147483647, %v119
    %v200 = vand.u32 2147483647, %v120
    %v201 = vand.u32 2147483647, %v121
    %v202 = vand.u32 2147483647, %v122
    %v203 = vand.u32 2147483647, %v123
    %v204 = vand.u32 2147483647, %v124
    %v205 = vand.u32 2147483647, %v125
    %v206 = vand.u32 2147483647, %v126
    %v207 = vand.u32 2147483647, %v127
    %v208 = vand.u32 2147483647, %v128
    %v209 = vand.u32 2147483647, %v129
    %v210 = vand.u32 2147483647, %v130
    %v211 = vand.u32 2147483647, %v131
    %v212 = vand.u32 2147483647, %v132
    %v213 = vsub.f32 0.0, %v197
    %v214 = vsub.f32 0.0, %v198
    %v215 = vsub.f32 0.0, %v199
    %v216 = vsub.f32 0.0, %v200
    %v217 = vsub.f32 0.0, %v201
    %v218 = vsub.f32 0.0, %v202
    %v219 = vsub.f32 0.0, %v203
    %v220 = vsub.f32 0.0, %v204
    %v221 = vsub.f32 0.0, %v205
    %v222 = vsub.f32 0.0, %v206
    %v223 = vsub.f32 0.0, %v207
    %v224 = vsub.f32 0.0, %v208
    %v225 = vsub.f32 0.0, %v209
    %v226 = vsub.f32 0.0, %v210
    %v227 = vsub.f32 0.0, %v211
    %v228 = vsub.f32 0.0, %v212
    %v229 = vmul.f32 %v213, 1.442695
    %v230 = vpow.pop %v229
    %v231 = vmul.f32 %v214, 1.442695
    %v232 = vpow.pop %v231
    %v233 = vmul.f32 %v215, 1.442695
    %v234 = vpow.pop %v233
    %v235 = vmul.f32 %v216, 1.442695
    %v236 = vpow.pop %v235
    %v237 = vmul.f32 %v217, 1.442695
    %v238 = vpow.pop %v237
    %v239 = vmul.f32 %v218, 1.442695
    %v240 = vpow.pop %v239
    %v241 = vmul.f32 %v219, 1.442695
    %v242 = vpow.pop %v241
    %v243 = vmul.f32 %v220, 1.442695
    %v244 = vpow.pop %v243
    %v245 = vmul.f32 %v221, 1.442695
    %v246 = vpow.pop %v245
    %v247 = vmul.f32 %v222, 1.442695
    %v248 = vpow.pop %v247
    %v249 = vmul.f32 %v223, 1.442695
    %v250 = vpow.pop %v249
    %v251 = vmul.f32 %v224, 1.442695
    %v252 = vpow.pop %v251
    %v253 = vmul.f32 %v225, 1.442695
    %v254 = vpow.pop %v253
    %v255 = vmul.f32 %v226, 1.442695
    %v256 = vpow.pop %v255
    %v257 = vmul.f32 %v227, 1.442695
    %v258 = vpow.pop %v257
    %v259 = vmul.f32 %v228, 1.442695
    %v260 = vpow.pop %v259
    %v261 = vadd.f32 %v230, 1.0
    %v262 = vadd.f32 %v232, 1.0
    %v263 = vadd.f32 %v234, 1.0
    %v264 = vadd.f32 %v236, 1.0
    %v265 = vadd.f32 %v238, 1.0
    %v266 = vadd.f32 %v240, 1.0
    %v267 = vadd.f32 %v242, 1.0
    %v268 = vadd.f32 %v244, 1.0
    %v269 = vadd.f32 %v246, 1.0
    %v270 = vadd.f32 %v248, 1.0
    %v271 = vadd.f32 %v250, 1.0
    %v272 = vadd.f32 %v252, 1.0
    %v273 = vadd.f32 %v254, 1.0
    %v274 = vadd.f32 %v256, 1.0
    %v275 = vadd.f32 %v258, 1.0
    %v276 = vadd.f32 %v260, 1.0
    %v277 = vlog2.pop %v261
    %v278 = vmul.f32 %v277, 0.6931472
    %v279 = vlog2.pop %v262
    %v280 = vmul.f32 %v279, 0.6931472
    %v281 = vlog2.pop %v263
    %v282 = vmul.f32 %v281, 0.6931472
    %v283 = vlog2.pop %v264
    %v284 = vmul.f32 %v283, 0.6931472
    %v285 = vlog2.pop %v265
    %v286 = vmul.f32 %v285, 0.6931472
    %v287 = vlog2.pop %v266
    %v288 = vmul.f32 %v287, 0.6931472
    %v289 = vlog2.pop %v267
    %v290 = vmul.f32 %v289, 0.6931472
    %v291 = vlog2.pop %v268
    %v292 = vmul.f32 %v291, 0.6931472
    %v293 = vlog2.pop %v269
    %v294 = vmul.f32 %v293, 0.6931472
    %v295 = vlog2.pop %v270
    %v296 = vmul.f32 %v295, 0.6931472
    %v297 = vlog2.pop %v271
    %v298 = vmul.f32 %v297, 0.6931472
    %v299 = vlog2.pop %v272
    %v300 = vmul.f32 %v299, 0.6931472
    %v301 = vlog2.pop %v273
    %v302 = vmul.f32 %v301, 0.6931472
    %v303 = vlog2.pop %v274
    %v304 = vmul.f32 %v303, 0.6931472
    %v305 = vlog2.pop %v275
    %v306 = vmul.f32 %v305, 0.6931472
    %v307 = vlog2.pop %v276
    %v308 = vmul.f32 %v307, 0.6931472
    %v309 = vadd.f32 %v181, %v278
    %v310 = vadd.f32 %v182, %v280
    %v311 = vadd.f32 %v183, %v282
    %v312 = vadd.f32 %v184, %v284
    %v313 = vadd.f32 %v185, %v286
    %v314 = vadd.f32 %v186, %v288
    %v315 = vadd.f32 %v187, %v290
    %v316 = vadd.f32 %v188, %v292
    %v317 = vadd.f32 %v189, %v294
    %v318 = vadd.f32 %v190, %v296
    %v319 = vadd.f32 %v191, %v298
    %v320 = vadd.f32 %v192, %v300
    %v321 = vadd.f32 %v193, %v302
    %v322 = vadd.f32 %v194, %v304
    %v323 = vadd.f32 %v195, %v306
    %v324 = vadd.f32 %v196, %v308
    %v325 = vadd.f32 %v165, %v309
    %v326 = vadd.f32 %v166, %v310
    %v327 = vadd.f32 %v167, %v311
    %v328 = vadd.f32 %v168, %v312
    %v329 = vadd.f32 %v169, %v313
    %v330 = vadd.f32 %v170, %v314
    %v331 = vadd.f32 %v171, %v315
    %v332 = vadd.f32 %v172, %v316
    %v333 = vadd.f32 %v173, %v317
    %v334 = vadd.f32 %v174, %v318
    %v335 = vadd.f32 %v175, %v319
    %v336 = vadd.f32 %v176, %v320
    %v337 = vadd.f32 %v177, %v321
    %v338 = vadd.f32 %v178, %v322
    %v339 = vadd.f32 %v179, %v323
    %v340 = vadd.f32 %v180, %v324
    %v341 = vld [vmem:[#allocation8] sm:$0xff]
    %v342 = vld [vmem:[#allocation8 + $0x8] sm:$0xff]
    %v343 = vadd.f32 %v325, %v327
    %v344 = vadd.f32 %v343, %v329
    %v345 = vadd.f32 %v344, %v331
    %v346 = vadd.f32 %v345, %v333
    %v347 = vadd.f32 %v346, %v335
    %v348 = vadd.f32 %v347, %v337
    %v349 = vadd.f32 %v348, %v339
    %v350 = vadd.f32 %v326, %v328
    %v351 = vadd.f32 %v350, %v330
    %v352 = vadd.f32 %v351, %v332
    %v353 = vadd.f32 %v352, %v334
    %v354 = vadd.f32 %v353, %v336
    %v355 = vadd.f32 %v354, %v338
    %v356 = vadd.f32 %v355, %v340
    %v357 = vadd.f32 %v341, %v349
    %v358 = vadd.f32 %v342, %v356
    %359 = vst [vmem:[#allocation8] sm:$0xff] %v357
    %360 = vst [vmem:[#allocation8 + $0x8] sm:$0xff] %v358
    // Predicated region
    $region30: #{tpu_custom_call.1} parent=1 // pred_check
      _
    $region31: #{tpu_custom_call.1} parent=1 // pred_check_branch
      %362 = sbr.rel (0) target = $region33
    $region32: #{tpu_custom_call.1} parent=1 // pred_region
      %s364 = ssub.s32 256, 256
      %365 = vsyncadd [#allocation4], %s364
      %s367 = sshll.u32 [#allocation8], 4
      %s368 = int_to_ptr.vmem [resolvable:$true] %s367
      %370 = dma.vmem_to_hbm [thread:$0]  %s368, 256, %s3, [#allocation4]
    $region33: #{tpu_custom_call.1} parent=1 // pred_fallthru
      _
    // Predicated region
    $region34: #{tpu_custom_call.1} parent=1 // pred_check
      _
    $region35: #{tpu_custom_call.1} parent=1 // pred_check_branch
      %372 = sbr.rel (0) target = $region37
    $region36: #{tpu_custom_call.1} parent=1 // pred_region
      %373 = dma.done [#allocation4], 256
    $region37: #{tpu_custom_call.1} parent=1 // pred_fallthru
      _
    %374 = vsyncpa [#allocation3], 1
    %375 = vsyncpa [#allocation6], 1
    %376 = vsyncpa [#allocation4], 1

</llo_original>
